<compile_context>
chip_gen: v6e
topology: v6e:2x2x1
jax: 0.10.0
libtpu: 0.0.40
codegen_flags: <defaults>
</compile_context>

<pallas_src>
import functools

import jax
import jax.numpy as jnp
import numpy as np
from jax import lax
from jax.experimental import pallas as pl
from jax.experimental.pallas import tpu as pltpu


def _icgn_kernel(x_ref, pts_ref, w0_ref, b0_ref, m_ref, o_ref, *,
                 n_pts, p_chunk, inv_n, mxu_dtype):
    """Fused (1/N) * sum_p J(p*x)^T J(p*x) x for one tile of batch rows.

    x_ref   : (TB, in_dim)      f32, VMEM
    pts_ref : (n_pts, 1)        f32, VMEM  (quadrature points, resident)
    w0_ref  : (hidden, in_dim)  f32, VMEM  (resident across grid)
    b0_ref  : (1, hidden)       f32, VMEM  (resident)
    m_ref   : (hidden, hidden)  f32, VMEM  (resident; M = W1^T @ W1)
    o_ref   : (TB, in_dim)      f32, VMEM
    """
    x = x_ref[...]
    w0 = w0_ref[...]
    b0 = b0_ref[...]
    m = m_ref[...]

    # Contract feature dims against dim 1 of the weight (A @ W^T) without
    # materializing a transposed weight copy.
    dn_t = (((1,), (1,)), ((), ()))

    # u = x @ W0^T  -- shared by every quadrature point (v == x, z == p*x).
    u = lax.dot_general(x.astype(mxu_dtype), w0.astype(mxu_dtype), dn_t,
                        preferred_element_type=jnp.float32)       # (TB, hidden)
    tb, hidden = u.shape

    acc_g = jnp.zeros((tb, hidden), jnp.float32)

    # Static Python loop over quadrature chunks; each chunk does a single
    # (pc*TB, hidden) x (hidden, hidden) matmul against M.
    for p0 in range(0, n_pts, p_chunk):
        pc = min(p_chunk, n_pts - p0)
        p = pts_ref[p0:p0 + pc, :]                                # (pc, 1)
        a = p[:, :, None] * u[None, :, :] + b0[None, :, :]        # (pc, TB, hidden)
        th = jnp.tanh(0.5 * a)
        s = 0.25 * (1.0 - th * th)                                # sigmoid'(a)
        t = u[None, :, :] * s                                     # jvp thru act
        t2 = t.reshape(pc * tb, hidden)                           # collapse p into M-dim
        g2 = jnp.dot(t2.astype(mxu_dtype), m.astype(mxu_dtype),
                     preferred_element_type=jnp.float32)          # (pc*TB, hidden)
        g = g2.reshape(pc, tb, hidden) * s                        # vjp thru act
        acc_g = acc_g + g.sum(axis=0)

    # r = (sum_p g_p) @ W0 , scaled by 1/N  (vjp through the first Linear).
    r = jnp.dot(acc_g.astype(mxu_dtype), w0.astype(mxu_dtype),
                preferred_element_type=jnp.float32)               # (TB, in_dim)
    o_ref[...] = (r * inv_n).astype(o_ref.dtype)


def _round_up(a, m):
    return ((a + m - 1) // m) * m


def _tensorcores_per_chip():
    """Best-effort TensorCore-per-chip count (v7x == 2); safe fallback is 1."""
    try:
        info = pltpu.get_tpu_info()
        for attr in ("num_cores", "tensor_cores_per_chip", "cores_per_chip",
                     "num_tensorcores"):
            v = getattr(info, attr, None)
            if v:
                return int(v)
    except Exception:
        pass
    return 1


def _vmem_limit_bytes():
    """Scoped-VMEM limit derived from the actual device; v7x-safe fallback."""
    cap = 64 * 1024 * 1024
    try:
        cap = int(pltpu.get_tpu_info().vmem_capacity_bytes)
    except Exception:
        pass
    return max(32 * 1024 * 1024, min(cap * 3 // 4, 96 * 1024 * 1024))


def icgn_forward(x, params, pts, *, tile_b=1024, mxu_dtype=jnp.float32):
    """Equivalent of ICGN.forward(x, N=len(pts)) with fixed quadrature pts."""
    w0, b0, w1, b1 = params  # b1 unused: constant offset does not affect J
    b, in_dim = x.shape
    hidden = w0.shape[0]
    n = int(pts.shape[0])

    w0f = w0.astype(jnp.float32)
    b0_2d = b0.reshape(1, hidden).astype(jnp.float32)
    # Fold the second Linear once: the quadrature loop only sees M = W1^T W1.
    m = (w1.astype(jnp.float32).T @ w1.astype(jnp.float32))
    pts_2d = pts.reshape(n, 1).astype(jnp.float32)

    # Batch tiling: multiple of 8 (f32 sublanes); pad the batch instead of
    # asserting divisibility.  Only force extra grid steps when the chip has
    # more than one TensorCore (v7x); on v5e/v6e the grid is a serial loop.
    cores = _tensorcores_per_chip()
    tile_b = max(8, min(_round_up(tile_b, 8), _round_up(b, 8)))
    padded_b = _round_up(b, tile_b)
    if cores > 1:
        while padded_b // tile_b < cores and tile_b > 8:
            tile_b = max(8, _round_up(tile_b // 2, 8))
            padded_b = _round_up(b, tile_b)
    if padded_b != b:
        x_p = jnp.zeros((padded_b, in_dim), jnp.float32).at[:b, :].set(
            x.astype(jnp.float32))
    else:
        x_p = x.astype(jnp.float32)

    vmem_limit = _vmem_limit_bytes()
    # Chunk the quadrature axis so in-loop temporaries fit comfortably.
    bytes_per_p = 6 * tile_b * hidden * 4
    p_chunk = int(max(1, min(n, (vmem_limit // 3) // max(bytes_per_p, 1))))

    grid = (padded_b // tile_b,)
    row_spec = pl.BlockSpec((tile_b, in_dim), lambda i: (i, 0))

    def const_spec(shape):
        # Grid-invariant operands: with large weights (v7x, 64 MiB VMEM) skip
        # double-buffering; they are fetched once anyway.
        if hidden >= 1024:
            return pl.BlockSpec(shape, lambda i: (0,) * len(shape),
                                pipeline_mode=pl.Buffered(1))
        return pl.BlockSpec(shape, lambda i: (0,) * len(shape))

    flops = padded_b * (4 * in_dim * hidden + n * (2 * hidden * hidden + 6 * hidden))
    bytes_accessed = 4 * (2 * padded_b * in_dim
                          + hidden * in_dim + hidden + hidden * hidden + n)

    out = pl.pallas_call(
        functools.partial(_icgn_kernel, n_pts=n, p_chunk=p_chunk,
                          inv_n=1.0 / n, mxu_dtype=mxu_dtype),
        out_shape=jax.ShapeDtypeStruct((padded_b, in_dim), jnp.float32),
        grid_spec=pltpu.PrefetchScalarGridSpec(
            num_scalar_prefetch=0,
            grid=grid,
            in_specs=[
                row_spec,                       # x tile
                const_spec((n, 1)),             # quadrature points
                const_spec((hidden, in_dim)),   # W0
                const_spec((1, hidden)),        # b0
                const_spec((hidden, hidden)),   # M = W1^T W1
            ],
            out_specs=row_spec,
        ),
        compiler_params=pltpu.CompilerParams(
            dimension_semantics=("parallel",),
            vmem_limit_bytes=vmem_limit,
        ),
        cost_estimate=pl.CostEstimate(
            flops=int(flops),
            transcendentals=int(padded_b * n * hidden),
            bytes_accessed=int(bytes_accessed),
        ),
    )(x_p, pts_2d, w0f, b0_2d, m)

    # TODO(synk): for production shapes with in_dim/hidden << 128 a fully
    # lane-dense transposed layout (batch on lanes) would further unmask the
    # output stores; output traffic is negligible at these shapes.
    return out[:b]


# ---------------------------- pure-JAX reference ----------------------------
def _forward_(params, z):
    w0, b0, w1, b1 = params
    return jax.nn.sigmoid(z @ w0.T + b0) @ w1.T + b1


def icgn_forward_ref(x, params, pts):
    b, in_dim = x.shape
    n = pts.shape[0]
    z = (x[:, None, :] * pts[None, :, None]).reshape(b * n, in_dim)
    v = jnp.broadcast_to(x[:, None, :], (b, n, in_dim)).reshape(b * n, in_dim)
    f = lambda zz: _forward_(params, zz)
    _, w = jax.jvp(f, (z,), (v,))          # torch.autograd.functional.jvp
    _, vjp_fn = jax.vjp(f, z)
    (r,) = vjp_fn(w)                       # torch.autograd.functional.vjp
    return r.reshape(b, n, in_dim).sum(axis=1) / n


if __name__ == "__main__":
    in_dim, hidden = 8, 32
    batch, n_pts = 2, 8

    key = jax.random.PRNGKey(0)
    k_x, k_pts, k0w, k0b, k1w, k1b = jax.random.split(key, 6)

    # deterministic nn.Linear-style init: U(-1/sqrt(fan_in), 1/sqrt(fan_in))
    lim0 = 1.0 / np.sqrt(in_dim)
    lim1 = 1.0 / np.sqrt(hidden)
    w0 = jax.random.uniform(k0w, (hidden, in_dim), jnp.float32, -lim0, lim0)
    b0 = jax.random.uniform(k0b, (hidden,), jnp.float32, -lim0, lim0)
    w1 = jax.random.uniform(k1w, (hidden, hidden), jnp.float32, -lim1, lim1)
    b1 = jax.random.uniform(k1b, (hidden,), jnp.float32, -lim1, lim1)
    params = (w0, b0, w1, b1)

    x = jax.random.normal(k_x, (batch, in_dim), jnp.float32)
    # torch.rand(N) quadrature points, fixed deterministically here.
    # TODO(synk): the module samples pts inside forward(); RNG stays host-side.
    pts = jax.random.uniform(k_pts, (n_pts,), jnp.float32)

    y_ref = icgn_forward_ref(x, params, pts)

    # f32-MXU path: strict check.
    y = icgn_forward(x, params, pts)
    y = jax.block_until_ready(y)
    np.testing.assert_allclose(np.asarray(y), np.asarray(y_ref),
                               rtol=1e-5, atol=1e-5)

    # bf16-MXU path (intentional precision trade for MXU throughput).
    y_bf16 = icgn_forward(x, params, pts, mxu_dtype=jnp.bfloat16)
    y_bf16 = jax.block_until_ready(y_bf16)
    np.testing.assert_allclose(np.asarray(y_bf16), np.asarray(y_ref),
                               rtol=5e-2, atol=5e-3)

    print("KERNEL_OK")
</pallas_src>

<mosaic_0001>
module attributes {stable_mosaic.version = 11 : i64} {
  func.func @_icgn_kernel(%arg0: i32, %arg1: memref<8x8xf32, #tpu.memory_space<vmem>>, %arg2: memref<8x1xf32, #tpu.memory_space<vmem>>, %arg3: memref<32x8xf32, #tpu.memory_space<vmem>>, %arg4: memref<1x32xf32, #tpu.memory_space<vmem>>, %arg5: memref<32x32xf32, #tpu.memory_space<vmem>>, %arg6: memref<8x8xf32, #tpu.memory_space<vmem>>) attributes {dimension_semantics = [#tpu.dimension_semantics<parallel>], iteration_bounds = array<i64: 1>, scalar_prefetch = 0 : i64, scratch_operands = 0 : i64, tpu.core_type = #tpu.core_type<tc>, window_params = [{transform_indices = @transform_0, window_bounds = array<i64: 8, 8>}, {pipeline_mode = #tpu.pipeline_mode<synchronous>, transform_indices = @transform_1, window_bounds = array<i64: 8, 1>}, {pipeline_mode = #tpu.pipeline_mode<synchronous>, transform_indices = @transform_2, window_bounds = array<i64: 32, 8>}, {pipeline_mode = #tpu.pipeline_mode<synchronous>, transform_indices = @transform_3, window_bounds = array<i64: 1, 32>}, {pipeline_mode = #tpu.pipeline_mode<synchronous>, transform_indices = @transform_4, window_bounds = array<i64: 32, 32>}, {transform_indices = @transform_5, window_bounds = array<i64: 8, 8>}]} {
    %c0 = arith.constant 0 : index
    %c0_0 = arith.constant 0 : index
    %0 = vector.load %arg1[%c0, %c0_0] : memref<8x8xf32, #tpu.memory_space<vmem>>, vector<8x8xf32>
    %c0_1 = arith.constant 0 : index
    %c0_2 = arith.constant 0 : index
    %1 = vector.load %arg3[%c0_1, %c0_2] : memref<32x8xf32, #tpu.memory_space<vmem>>, vector<32x8xf32>
    %c0_3 = arith.constant 0 : index
    %c0_4 = arith.constant 0 : index
    %2 = vector.load %arg4[%c0_3, %c0_4] : memref<1x32xf32, #tpu.memory_space<vmem>>, vector<1x32xf32>
    %c0_5 = arith.constant 0 : index
    %c0_6 = arith.constant 0 : index
    %3 = vector.load %arg5[%c0_5, %c0_6] : memref<32x32xf32, #tpu.memory_space<vmem>>, vector<32x32xf32>
    %cst = arith.constant dense<0.000000e+00> : vector<8x32xf32>
    %4 = tpu.matmul %0, %1, %cst {dimension_numbers = #tpu.dot_dimension_numbers<[1], [1], [0], [0], [0, 0, 1, 0], [], []>} : vector<8x8xf32>, vector<32x8xf32>, vector<8x32xf32> -> vector<8x32xf32>
    %cst_7 = arith.constant 0.000000e+00 : f32
    %5 = vector.broadcast %cst_7 : f32 to vector<8x32xf32>
    %c0_8 = arith.constant 0 : index
    %c0_9 = arith.constant 0 : index
    %6 = vector.load %arg2[%c0_8, %c0_9] : memref<8x1xf32, #tpu.memory_space<vmem>>, vector<8x1xf32>
    %7 = vector.shape_cast %6 : vector<8x1xf32> to vector<8x1x1xf32>
    %8 = vector.shape_cast %4 : vector<8x32xf32> to vector<1x8x32xf32>
    %9 = vector.broadcast %7 : vector<8x1x1xf32> to vector<8x8x32xf32>
    %10 = vector.broadcast %8 : vector<1x8x32xf32> to vector<8x8x32xf32>
    %11 = arith.mulf %9, %10 : vector<8x8x32xf32>
    %12 = vector.shape_cast %2 : vector<1x32xf32> to vector<1x1x32xf32>
    %13 = vector.broadcast %12 : vector<1x1x32xf32> to vector<8x8x32xf32>
    %14 = arith.addf %11, %13 : vector<8x8x32xf32>
    %cst_10 = arith.constant 5.000000e-01 : f32
    %15 = vector.broadcast %cst_10 : f32 to vector<8x8x32xf32>
    %16 = arith.mulf %15, %14 : vector<8x8x32xf32>
    %17 = math.tanh %16 : vector<8x8x32xf32>
    %18 = arith.mulf %17, %17 : vector<8x8x32xf32>
    %cst_11 = arith.constant 1.000000e+00 : f32
    %19 = vector.broadcast %cst_11 : f32 to vector<8x8x32xf32>
    %20 = arith.subf %19, %18 : vector<8x8x32xf32>
    %cst_12 = arith.constant 2.500000e-01 : f32
    %21 = vector.broadcast %cst_12 : f32 to vector<8x8x32xf32>
    %22 = arith.mulf %21, %20 : vector<8x8x32xf32>
    %23 = vector.shape_cast %4 : vector<8x32xf32> to vector<1x8x32xf32>
    %24 = vector.broadcast %23 : vector<1x8x32xf32> to vector<8x8x32xf32>
    %25 = arith.mulf %24, %22 : vector<8x8x32xf32>
    %26 = vector.shape_cast %25 : vector<8x8x32xf32> to vector<64x32xf32>
    %cst_13 = arith.constant dense<0.000000e+00> : vector<64x32xf32>
    %27 = tpu.matmul %26, %3, %cst_13 {dimension_numbers = #tpu.dot_dimension_numbers<[1], [0], [0], [1], [0, 0, 1, 1], [], []>} : vector<64x32xf32>, vector<32x32xf32>, vector<64x32xf32> -> vector<64x32xf32>
    %28 = vector.shape_cast %27 : vector<64x32xf32> to vector<8x8x32xf32>
    %29 = arith.mulf %28, %22 : vector<8x8x32xf32>
    %cst_14 = arith.constant dense<0.000000e+00> : vector<8x32xf32>
    %30 = vector.multi_reduction <add>, %29, %cst_14 [0] : vector<8x8x32xf32> to vector<8x32xf32>
    %31 = arith.addf %5, %30 : vector<8x32xf32>
    %cst_15 = arith.constant dense<0.000000e+00> : vector<8x8xf32>
    %32 = tpu.matmul %31, %1, %cst_15 {dimension_numbers = #tpu.dot_dimension_numbers<[1], [0], [0], [1], [0, 0, 1, 1], [], []>} : vector<8x32xf32>, vector<32x8xf32>, vector<8x8xf32> -> vector<8x8xf32>
    %cst_16 = arith.constant 1.250000e-01 : f32
    %33 = vector.broadcast %cst_16 : f32 to vector<8x8xf32>
    %34 = arith.mulf %32, %33 : vector<8x8xf32>
    %c0_17 = arith.constant 0 : index
    %c0_18 = arith.constant 0 : index
    %35 = vector.load %arg6[%c0_17, %c0_18] : memref<8x8xf32, #tpu.memory_space<vmem>>, vector<8x8xf32>
    tpu.vector_store %arg6[%c0_17, %c0_18], %34 {strides = array<i32>} : memref<8x8xf32, #tpu.memory_space<vmem>>, vector<8x8xf32>,
    return
  }
  func.func @transform_0(%arg0: i32) -> (i32, i32) {
    %c0_i32 = arith.constant 0 : i32
    %c0_i32_0 = arith.constant 0 : i32
    return %arg0, %c0_i32 : i32, i32
  }
  func.func @transform_1(%arg0: i32) -> (i32, i32) {
    %c0_i32 = arith.constant 0 : i32
    %c0_i32_0 = arith.constant 0 : i32
    %c0_i32_1 = arith.constant 0 : i32
    return %c0_i32, %c0_i32_0 : i32, i32
  }
  func.func @transform_2(%arg0: i32) -> (i32, i32) {
    %c0_i32 = arith.constant 0 : i32
    %c0_i32_0 = arith.constant 0 : i32
    %c0_i32_1 = arith.constant 0 : i32
    return %c0_i32, %c0_i32_0 : i32, i32
  }
  func.func @transform_3(%arg0: i32) -> (i32, i32) {
    %c0_i32 = arith.constant 0 : i32
    %c0_i32_0 = arith.constant 0 : i32
    %c0_i32_1 = arith.constant 0 : i32
    return %c0_i32, %c0_i32_0 : i32, i32
  }
  func.func @transform_4(%arg0: i32) -> (i32, i32) {
    %c0_i32 = arith.constant 0 : i32
    %c0_i32_0 = arith.constant 0 : i32
    %c0_i32_1 = arith.constant 0 : i32
    return %c0_i32, %c0_i32_0 : i32, i32
  }
  func.func @transform_5(%arg0: i32) -> (i32, i32) {
    %c0_i32 = arith.constant 0 : i32
    %c0_i32_0 = arith.constant 0 : i32
    return %arg0, %c0_i32 : i32, i32
  }
}

</mosaic_0001>

<llo_original>
// kernel: tpu_custom_call.1
$region0: #{tpu_custom_call.1}
  #allocation0 [shape = 'u32[]', space=smem, size = 0x4, offset = 0x4, fixed_abs, tag = 'smem constant byte address 0x4 - core index']
  #allocation1 [shape = 'u32[144,128]{1,0:T(1,128)}', space=vmem, size = 0x12000, scoped, tag = 'internal scratch']
  %s0 = inlined_call_operand.vmem [shape: f32[8,8], index: 0, kind: input, shape index: {}]
  %s1 = inlined_call_operand.vmem [shape: f32[8,1], index: 1, kind: input, shape index: {}]
  %s2 = inlined_call_operand.vmem [shape: f32[32,8], index: 2, kind: input, shape index: {}]
  %s3 = inlined_call_operand.vmem [shape: f32[1,32], index: 3, kind: input, shape index: {}]
  %s4 = inlined_call_operand.vmem [shape: f32[32,32], index: 4, kind: input, shape index: {}]
  %s5 = inlined_call_operand.hbm [shape: f32[8,8], index: 5, kind: output, shape index: {}]
  %s6 = sld [smem:[#allocation0]]
  $region30: #{tpu_custom_call.1} parent=0
    _
  %s8 = ssub.s32 1, %s6
  %s9 = scalar_select 0, %s8, %s6
  $region1: #{tpu_custom_call.1} parent=0
    #allocation2 [shape = 'u8[4096]{0}', space=vmem, size = 0x1000, scoped, tag = 'output window, operand 0, single buffered']
    #allocation3 [shape = 's32[1]{0}', space=sflag, size = 0x4, scoped, tag = 'scoped memory for tpu_custom_call.1']
    %10 = vsyncpa [#allocation3], 0
    // Predicated region
    $region2: #{tpu_custom_call.1} parent=1 // pred_check
      _
    $region3: #{tpu_custom_call.1} parent=1 // pred_check_branch
      %12 = sbr.rel (0) target = $region5
    $region4: #{tpu_custom_call.1} parent=1 // pred_region
      _
    $region5: #{tpu_custom_call.1} parent=1 // pred_fallthru
      _
    // Predicated region
    $region6: #{tpu_custom_call.1} parent=1 // pred_check
      _
    $region7: #{tpu_custom_call.1} parent=1 // pred_check_branch
      %14 = sbr.rel (0) target = $region9
    $region8: #{tpu_custom_call.1} parent=1 // pred_region
      _
    $region9: #{tpu_custom_call.1} parent=1 // pred_fallthru
      _
    // Predicated region
    $region10: #{tpu_custom_call.1} parent=1 // pred_check
      _
    $region11: #{tpu_custom_call.1} parent=1 // pred_check_branch
      %16 = sbr.rel (0) target = $region13
    $region12: #{tpu_custom_call.1} parent=1 // pred_region
      _
    $region13: #{tpu_custom_call.1} parent=1 // pred_fallthru
      _
    // Predicated region
    $region14: #{tpu_custom_call.1} parent=1 // pred_check
      _
    $region15: #{tpu_custom_call.1} parent=1 // pred_check_branch
      %18 = sbr.rel (0) target = $region17
    $region16: #{tpu_custom_call.1} parent=1 // pred_region
      _
    $region17: #{tpu_custom_call.1} parent=1 // pred_fallthru
      _
    // Predicated region
    $region18: #{tpu_custom_call.1} parent=1 // pred_check
      _
    $region19: #{tpu_custom_call.1} parent=1 // pred_check_branch
      %20 = sbr.rel (0) target = $region21
    $region20: #{tpu_custom_call.1} parent=1 // pred_region
      _
    $region21: #{tpu_custom_call.1} parent=1 // pred_fallthru
      _
    %v21 = vld [vmem:[%s0] sm:$0xff]
    %v22 = vld [vmem:[%s2] sm:$0xff]
    %v23 = vld [vmem:[%s2 + $0x8] sm:$0xff]
    %v24 = vld [vmem:[%s2 + $0x10] sm:$0xff]
    %v25 = vld [vmem:[%s2 + $0x18] sm:$0xff]
    %v26 = vld [vmem:[%s3] sm:$0x1]
    %v27 = vld [vmem:[%s4] sm:$0xff]
    %v28 = vld [vmem:[%s4 + $0x8] sm:$0xff]
    %v29 = vld [vmem:[%s4 + $0x10] sm:$0xff]
    %v30 = vld [vmem:[%s4 + $0x18] sm:$0xff]
    %vm31 = vcmask 64512
    %v33 = vsel %vm31, %v21, 0
    %v36 = vsel %vm31, %v22, 0
    %v39 = vsel %vm31, %v23, 0
    %v42 = vsel %vm31, %v24, 0
    %v45 = vsel %vm31, %v25, 0
    %47 = vmatprep.subr.mxu0 0.0
    %48 = vmatpush1.xpose.msra.mxu0 0.0
    %49 = vmatprep.subr.mxu0 0.0
    %50 = vmatpush1.xpose.msra.mxu0 0.0
    %51 = vmatprep.subr.mxu0 0.0
    %52 = vmatpush1.xpose.msra.mxu0 0.0
    %53 = vmatprep.subr.mxu0 0.0
    %54 = vmatpush1.xpose.msra.mxu0 0.0
    %55 = vmatprep.subr.mxu0 0.0
    %56 = vmatpush1.xpose.msra.mxu0 0.0
    %57 = vmatprep.subr.mxu0 0.0
    %58 = vmatpush1.xpose.msra.mxu0 0.0
    %59 = vmatprep.subr.mxu0 0.0
    %60 = vmatpush1.xpose.msra.mxu0 0.0
    %61 = vmatprep.subr.mxu0 0.0
    %62 = vmatpush1.xpose.msra.mxu0 0.0
    %63 = vmatprep.subr.mxu0 0.0
    %64 = vmatpush1.xpose.msra.mxu0 0.0
    %65 = vmatprep.subr.mxu0 0.0
    %66 = vmatpush1.xpose.msra.mxu0 0.0
    %67 = vmatprep.subr.mxu0 0.0
    %68 = vmatpush1.xpose.msra.mxu0 0.0
    %69 = vmatprep.subr.mxu0 0.0
    %70 = vmatpush1.xpose.msra.mxu0 0.0
    %71 = vmatprep.subr.mxu0 0.0
    %72 = vmatpush1.xpose.msra.mxu0 %v45
    %73 = vmatprep.subr.mxu0 0.0
    %74 = vmatpush1.xpose.msra.mxu0 %v42
    %75 = vmatprep.subr.mxu0 0.0
    %76 = vmatpush1.xpose.msra.mxu0 %v39
    %77 = vmatprep.subr.mxu0 0.0
    %78 = vmatpush1.xpose.msra.mxu0 %v36
    %79 = vmatprep.subr.mxu0 0.0
    %80 = vmatpush2.xpose.msra.mxu0 0.0
    %81 = vmatprep.subr.mxu0 0.0
    %82 = vmatpush2.xpose.msra.mxu0 0.0
    %83 = vmatprep.subr.mxu0 0.0
    %84 = vmatpush2.xpose.msra.mxu0 0.0
    %85 = vmatprep.subr.mxu0 0.0
    %86 = vmatpush2.xpose.msra.mxu0 0.0
    %87 = vmatprep.subr.mxu0 0.0
    %88 = vmatpush2.xpose.msra.mxu0 0.0
    %89 = vmatprep.subr.mxu0 0.0
    %90 = vmatpush2.xpose.msra.mxu0 0.0
    %91 = vmatprep.subr.mxu0 0.0
    %92 = vmatpush2.xpose.msra.mxu0 0.0
    %93 = vmatprep.subr.mxu0 0.0
    %94 = vmatpush2.xpose.msra.mxu0 0.0
    %95 = vmatprep.subr.mxu0 0.0
    %96 = vmatpush2.xpose.msra.mxu0 0.0
    %97 = vmatprep.subr.mxu0 0.0
    %98 = vmatpush2.xpose.msra.mxu0 0.0
    %99 = vmatprep.subr.mxu0 0.0
    %100 = vmatpush2.xpose.msra.mxu0 0.0
    %101 = vmatprep.subr.mxu0 0.0
    %102 = vmatpush2.xpose.msra.mxu0 0.0
    %103 = vmatprep.subr.mxu0 0.0
    %104 = vmatpush2.xpose.msra.mxu0 0.0
    %105 = vmatprep.subr.mxu0 0.0
    %106 = vmatpush2.xpose.msra.mxu0 0.0
    %107 = vmatprep.subr.mxu0 0.0
    %108 = vmatpush2.xpose.msra.mxu0 0.0
    %109 = vmatprep.subr.mxu0 0.0
    %110 = vmatpush2.xpose.msra.mxu0 0.0
    %111 = vmatprep.mubr.f32.mxu0 0.0
    %112 = vmatmul.mubr.f32.gmra.mxu0 %v33
    %v113 = vpop.f32.mrf.mxu0
    %v114 = vadd.f32 0.0, %v113
    %v115 = vpop.f32.mrf.mxu0
    %116 = vdwg.mxu0
    %v117 = vld [vmem:[%s1] sm:$0xff]
    %v119 = vcombine.high %v117, %v117
    %v121 = vunpack.c.l.s4 1966171168
    %v122 = vunpack.c.0.s8 %v121
    %v123 = vlaneseq
    %v124 = vshrl.u32 %v123, 7
    %v125 = vsub.s32 %v122, %v124
    %v126 = vrot.slane %v117, %v125
    %v128 = vunpack.c.l.s4 1966171168
    %v129 = vunpack.c.0.s8 %v128
    %v130 = vlaneseq
    %v131 = vshrl.u32 %v130, 7
    %v132 = vsub.s32 %v129, %v131
    %v133 = vrot.slane %v119, %v132
    %v134 = vcombine.high %v126, %v126
    %v135 = vcombine.high %v133, %v133
    %v137 = vunpack.c.l.s4 1966171168
    %v138 = vunpack.c.0.s8 %v137
    %v139 = vlaneseq
    %v140 = vshrl.u32 %v139, 7
    %v141 = vsub.s32 %v138, %v140
    %v142 = vrot.slane %v126, %v141
    %v144 = vunpack.c.l.s4 1966171168
    %v145 = vunpack.c.0.s8 %v144
    %v146 = vlaneseq
    %v147 = vshrl.u32 %v146, 7
    %v148 = vsub.s32 %v145, %v147
    %v149 = vrot.slane %v133, %v148
    %v151 = vunpack.c.l.s4 1966171168
    %v152 = vunpack.c.0.s8 %v151
    %v153 = vlaneseq
    %v154 = vshrl.u32 %v153, 7
    %v155 = vsub.s32 %v152, %v154
    %v156 = vrot.slane %v134, %v155
    %v158 = vunpack.c.l.s4 1966171168
    %v159 = vunpack.c.0.s8 %v158
    %v160 = vlaneseq
    %v161 = vshrl.u32 %v160, 7
    %v162 = vsub.s32 %v159, %v161
    %v163 = vrot.slane %v135, %v162
    %v164 = vcombine.high %v142, %v142
    %v165 = vcombine.high %v149, %v149
    %v166 = vcombine.high %v156, %v156
    %v167 = vcombine.high %v163, %v163
    %v168 = vlaneseq
    %v169 = vshrl.u32 %v168, 7
    %v170 = vsub.s32 0, %v169
    %v171 = vrot.slane %v142, %v170
    %v172 = vlaneseq
    %v173 = vshrl.u32 %v172, 7
    %v174 = vsub.s32 0, %v173
    %v175 = vrot.slane %v156, %v174
    %v176 = vlaneseq
    %v177 = vshrl.u32 %v176, 7
    %v178 = vsub.s32 0, %v177
    %v179 = vrot.slane %v164, %v178
    %v180 = vlaneseq
    %v181 = vshrl.u32 %v180, 7
    %v182 = vsub.s32 0, %v181
    %v183 = vrot.slane %v166, %v182
    %v184 = vlaneseq
    %v185 = vshrl.u32 %v184, 7
    %v186 = vsub.s32 0, %v185
    %v187 = vrot.slane %v149, %v186
    %v188 = vlaneseq
    %v189 = vshrl.u32 %v188, 7
    %v190 = vsub.s32 0, %v189
    %v191 = vrot.slane %v163, %v190
    %v192 = vlaneseq
    %v193 = vshrl.u32 %v192, 7
    %v194 = vsub.s32 0, %v193
    %v195 = vrot.slane %v165, %v194
    %v196 = vlaneseq
    %v197 = vshrl.u32 %v196, 7
    %v198 = vsub.s32 0, %v197
    %v199 = vrot.slane %v167, %v198
    %200 = vset.pattern.permute.xlu0 0
    %201 = vperm.xlu0 %200, %v171
    %v202 = vpop.permute.xlu0 %201
    %204 = vset.pattern.permute.xlu0 0
    %205 = vperm.xlu0 %204, %v175
    %v206 = vpop.permute.xlu0 %205
    %208 = vset.pattern.permute.xlu0 0
    %209 = vperm.xlu0 %208, %v179
    %v210 = vpop.permute.xlu0 %209
    %212 = vset.pattern.permute.xlu0 0
    %213 = vperm.xlu0 %212, %v183
    %v214 = vpop.permute.xlu0 %213
    %216 = vset.pattern.permute.xlu0 0
    %217 = vperm.xlu0 %216, %v187
    %v218 = vpop.permute.xlu0 %217
    %220 = vset.pattern.permute.xlu0 0
    %221 = vperm.xlu0 %220, %v191
    %v222 = vpop.permute.xlu0 %221
    %224 = vset.pattern.permute.xlu0 0
    %225 = vperm.xlu0 %224, %v195
    %v226 = vpop.permute.xlu0 %225
    %228 = vset.pattern.permute.xlu0 0
    %229 = vperm.xlu0 %228, %v199
    %v230 = vpop.permute.xlu0 %229
    %v232 = vmul.f32 %v202, %v114
    %v233 = vmul.f32 %v206, %v114
    %v234 = vmul.f32 %v210, %v114
    %v235 = vmul.f32 %v214, %v114
    %v236 = vmul.f32 %v218, %v114
    %v237 = vmul.f32 %v222, %v114
    %v238 = vmul.f32 %v226, %v114
    %v239 = vmul.f32 %v230, %v114
    %v241 = vlaneseq
    %v242 = vshrl.u32 %v241, 7
    %v243 = vsub.s32 0, %v242
    %v244 = vrot.slane %v26, %v243
    %v246 = vadd.f32 %v232, %v244
    %v247 = vadd.f32 %v233, %v244
    %v248 = vadd.f32 %v234, %v244
    %v249 = vadd.f32 %v235, %v244
    %v250 = vadd.f32 %v236, %v244
    %v251 = vadd.f32 %v237, %v244
    %v252 = vadd.f32 %v238, %v244
    %v253 = vadd.f32 %v239, %v244
    %v254 = vmul.f32 %v246, 0.5
    %v255 = vmul.f32 %v247, 0.5
    %v256 = vmul.f32 %v248, 0.5
    %v257 = vmul.f32 %v249, 0.5
    %v258 = vmul.f32 %v250, 0.5
    %v259 = vmul.f32 %v251, 0.5
    %v260 = vmul.f32 %v252, 0.5
    %v261 = vmul.f32 %v253, 0.5
    %v262 = vtanh.pop %v254
    %v263 = vtanh.pop %v255
    %v264 = vtanh.pop %v256
    %v265 = vtanh.pop %v257
    %v266 = vtanh.pop %v258
    %v267 = vtanh.pop %v259
    %v268 = vtanh.pop %v260
    %v269 = vtanh.pop %v261
    %v270 = vmul.f32 %v262, %v262
    %v271 = vmul.f32 %v263, %v263
    %v272 = vmul.f32 %v264, %v264
    %v273 = vmul.f32 %v265, %v265
    %v274 = vmul.f32 %v266, %v266
    %v275 = vmul.f32 %v267, %v267
    %v276 = vmul.f32 %v268, %v268
    %v277 = vmul.f32 %v269, %v269
    %v278 = vsub.f32 1.0, %v270
    %v279 = vsub.f32 1.0, %v271
    %v280 = vsub.f32 1.0, %v272
    %v281 = vsub.f32 1.0, %v273
    %v282 = vsub.f32 1.0, %v274
    %v283 = vsub.f32 1.0, %v275
    %v284 = vsub.f32 1.0, %v276
    %v285 = vsub.f32 1.0, %v277
    %v286 = vmul.f32 %v278, 0.25
    %v287 = vmul.f32 %v279, 0.25
    %v288 = vmul.f32 %v280, 0.25
    %v289 = vmul.f32 %v281, 0.25
    %v290 = vmul.f32 %v282, 0.25
    %v291 = vmul.f32 %v283, 0.25
    %v292 = vmul.f32 %v284, 0.25
    %v293 = vmul.f32 %v285, 0.25
    %v294 = vmul.f32 %v114, %v286
    %v295 = vmul.f32 %v114, %v287
    %v296 = vmul.f32 %v114, %v288
    %v297 = vmul.f32 %v114, %v289
    %v298 = vmul.f32 %v114, %v290
    %v299 = vmul.f32 %v114, %v291
    %v300 = vmul.f32 %v114, %v292
    %v301 = vmul.f32 %v114, %v293
    %vm302 = vcmask 261120
    %v304 = vsel %vm302, %v294, 0
    %v307 = vsel %vm302, %v295, 0
    %v310 = vsel %vm302, %v296, 0
    %v313 = vsel %vm302, %v297, 0
    %v316 = vsel %vm302, %v298, 0
    %v319 = vsel %vm302, %v299, 0
    %v322 = vsel %vm302, %v300, 0
    %v325 = vsel %vm302, %v301, 0
    %327 = vmatprep.subr.mxu0 0.0
    %328 = vmatpush1.msra.mxu0 0.0
    %329 = vmatprep.subr.mxu0 0.0
    %330 = vmatpush1.msra.mxu0 0.0
    %331 = vmatprep.subr.mxu0 0.0
    %332 = vmatpush1.msra.mxu0 0.0
    %333 = vmatprep.subr.mxu0 0.0
    %334 = vmatpush1.msra.mxu0 0.0
    %335 = vmatprep.subr.mxu0 0.0
    %336 = vmatpush1.msra.mxu0 0.0
    %337 = vmatprep.subr.mxu0 0.0
    %338 = vmatpush1.msra.mxu0 0.0
    %339 = vmatprep.subr.mxu0 0.0
    %340 = vmatpush1.msra.mxu0 0.0
    %341 = vmatprep.subr.mxu0 0.0
    %342 = vmatpush1.msra.mxu0 0.0
    %343 = vmatprep.subr.mxu0 0.0
    %344 = vmatpush1.msra.mxu0 0.0
    %345 = vmatprep.subr.mxu0 0.0
    %346 = vmatpush1.msra.mxu0 0.0
    %347 = vmatprep.subr.mxu0 0.0
    %348 = vmatpush1.msra.mxu0 0.0
    %349 = vmatprep.subr.mxu0 0.0
    %350 = vmatpush1.msra.mxu0 0.0
    %351 = vmatprep.subr.mxu0 0.0
    %352 = vmatpush1.msra.mxu0 %v30
    %353 = vmatprep.subr.mxu0 0.0
    %354 = vmatpush1.msra.mxu0 %v29
    %355 = vmatprep.subr.mxu0 0.0
    %356 = vmatpush1.msra.mxu0 %v28
    %357 = vmatprep.subr.mxu0 0.0
    %358 = vmatpush1.msra.mxu0 %v27
    %359 = vmatprep.subr.mxu0 0.0
    %360 = vmatpush2.msra.mxu0 0.0
    %361 = vmatprep.subr.mxu0 0.0
    %362 = vmatpush2.msra.mxu0 0.0
    %363 = vmatprep.subr.mxu0 0.0
    %364 = vmatpush2.msra.mxu0 0.0
    %365 = vmatprep.subr.mxu0 0.0
    %366 = vmatpush2.msra.mxu0 0.0
    %367 = vmatprep.subr.mxu0 0.0
    %368 = vmatpush2.msra.mxu0 0.0
    %369 = vmatprep.subr.mxu0 0.0
    %370 = vmatpush2.msra.mxu0 0.0
    %371 = vmatprep.subr.mxu0 0.0
    %372 = vmatpush2.msra.mxu0 0.0
    %373 = vmatprep.subr.mxu0 0.0
    %374 = vmatpush2.msra.mxu0 0.0
    %375 = vmatprep.subr.mxu0 0.0
    %376 = vmatpush2.msra.mxu0 0.0
    %377 = vmatprep.subr.mxu0 0.0
    %378 = vmatpush2.msra.mxu0 0.0
    %379 = vmatprep.subr.mxu0 0.0
    %380 = vmatpush2.msra.mxu0 0.0
    %381 = vmatprep.subr.mxu0 0.0
    %382 = vmatpush2.msra.mxu0 0.0
    %383 = vmatprep.subr.mxu0 0.0
    %384 = vmatpush2.msra.mxu0 0.0
    %385 = vmatprep.subr.mxu0 0.0
    %386 = vmatpush2.msra.mxu0 0.0
    %387 = vmatprep.subr.mxu0 0.0
    %388 = vmatpush2.msra.mxu0 0.0
    %389 = vmatprep.subr.mxu0 0.0
    %390 = vmatpush2.msra.mxu0 0.0
    %391 = vmatprep.mubr.f32.mxu0 0.0
    %392 = vmatmul.mubr.f32.gmra.mxu0 %v304
    %v393 = vpop.f32.mrf.mxu0
    %v394 = vadd.f32 0.0, %v393
    %v395 = vpop.f32.mrf.mxu0
    %396 = vmatprep.mubr.f32.mxu0 0.0
    %397 = vmatmul.mubr.f32.gmra.mxu0 %v307
    %v398 = vpop.f32.mrf.mxu0
    %v399 = vadd.f32 0.0, %v398
    %v400 = vpop.f32.mrf.mxu0
    %401 = vmatprep.mubr.f32.mxu0 0.0
    %402 = vmatmul.mubr.f32.gmra.mxu0 %v310
    %v403 = vpop.f32.mrf.mxu0
    %v404 = vadd.f32 0.0, %v403
    %v405 = vpop.f32.mrf.mxu0
    %406 = vmatprep.mubr.f32.mxu0 0.0
    %407 = vmatmul.mubr.f32.gmra.mxu0 %v313
    %v408 = vpop.f32.mrf.mxu0
    %v409 = vadd.f32 0.0, %v408
    %v410 = vpop.f32.mrf.mxu0
    %411 = vmatprep.mubr.f32.mxu0 0.0
    %412 = vmatmul.mubr.f32.gmra.mxu0 %v316
    %v413 = vpop.f32.mrf.mxu0
    %v414 = vadd.f32 0.0, %v413
    %v415 = vpop.f32.mrf.mxu0
    %416 = vmatprep.mubr.f32.mxu0 0.0
    %417 = vmatmul.mubr.f32.gmra.mxu0 %v319
    %v418 = vpop.f32.mrf.mxu0
    %v419 = vadd.f32 0.0, %v418
    %v420 = vpop.f32.mrf.mxu0
    %421 = vmatprep.mubr.f32.mxu0 0.0
    %422 = vmatmul.mubr.f32.gmra.mxu0 %v322
    %v423 = vpop.f32.mrf.mxu0
    %v424 = vadd.f32 0.0, %v423
    %v425 = vpop.f32.mrf.mxu0
    %426 = vmatprep.mubr.f32.mxu0 0.0
    %427 = vmatmul.mubr.f32.gmra.mxu0 %v325
    %v428 = vpop.f32.mrf.mxu0
    %v429 = vadd.f32 0.0, %v428
    %v430 = vpop.f32.mrf.mxu0
    %431 = vdwg.mxu0
    %v432 = vmul.f32 %v394, %v286
    %v433 = vmul.f32 %v399, %v287
    %v434 = vmul.f32 %v404, %v288
    %v435 = vmul.f32 %v409, %v289
    %v436 = vmul.f32 %v414, %v290
    %v437 = vmul.f32 %v419, %v291
    %v438 = vmul.f32 %v424, %v292
    %v439 = vmul.f32 %v429, %v293
    %v440 = vsel %vm302, %v432, 0.0
    %v441 = vsel %vm302, %v433, 0.0
    %v442 = vadd.f32 %v440, %v441
    %v443 = vsel %vm302, %v434, 0.0
    %v444 = vadd.f32 %v442, %v443
    %v445 = vsel %vm302, %v435, 0.0
    %v446 = vadd.f32 %v444, %v445
    %v447 = vsel %vm302, %v436, 0.0
    %v448 = vadd.f32 %v446, %v447
    %v449 = vsel %vm302, %v437, 0.0
    %v450 = vadd.f32 %v448, %v449
    %v451 = vsel %vm302, %v438, 0.0
    %v452 = vadd.f32 %v450, %v451
    %v453 = vsel %vm302, %v439, 0.0
    %v454 = vadd.f32 %v452, %v453
    %v455 = vadd.f32 %v454, 0.0
    %v457 = vsel %vm302, %v455, 0
    %459 = vmatprep.subr.mxu0 0.0
    %460 = vmatpush1.msra.mxu0 0.0
    %461 = vmatprep.subr.mxu0 0.0
    %462 = vmatpush1.msra.mxu0 0.0
    %463 = vmatprep.subr.mxu0 0.0
    %464 = vmatpush1.msra.mxu0 0.0
    %465 = vmatprep.subr.mxu0 0.0
    %466 = vmatpush1.msra.mxu0 0.0
    %467 = vmatprep.subr.mxu0 0.0
    %468 = vmatpush1.msra.mxu0 0.0
    %469 = vmatprep.subr.mxu0 0.0
    %470 = vmatpush1.msra.mxu0 0.0
    %471 = vmatprep.subr.mxu0 0.0
    %472 = vmatpush1.msra.mxu0 0.0
    %473 = vmatprep.subr.mxu0 0.0
    %474 = vmatpush1.msra.mxu0 0.0
    %475 = vmatprep.subr.mxu0 0.0
    %476 = vmatpush1.msra.mxu0 0.0
    %477 = vmatprep.subr.mxu0 0.0
    %478 = vmatpush1.msra.mxu0 0.0
    %479 = vmatprep.subr.mxu0 0.0
    %480 = vmatpush1.msra.mxu0 0.0
    %481 = vmatprep.subr.mxu0 0.0
    %482 = vmatpush1.msra.mxu0 0.0
    %483 = vmatprep.subr.mxu0 0.0
    %484 = vmatpush1.msra.mxu0 %v25
    %485 = vmatprep.subr.mxu0 0.0
    %486 = vmatpush1.msra.mxu0 %v24
    %487 = vmatprep.subr.mxu0 0.0
    %488 = vmatpush1.msra.mxu0 %v23
    %489 = vmatprep.subr.mxu0 0.0
    %490 = vmatpush1.msra.mxu0 %v22
    %491 = vmatprep.subr.mxu0 0.0
    %492 = vmatpush2.msra.mxu0 0.0
    %493 = vmatprep.subr.mxu0 0.0
    %494 = vmatpush2.msra.mxu0 0.0
    %495 = vmatprep.subr.mxu0 0.0
    %496 = vmatpush2.msra.mxu0 0.0
    %497 = vmatprep.subr.mxu0 0.0
    %498 = vmatpush2.msra.mxu0 0.0
    %499 = vmatprep.subr.mxu0 0.0
    %500 = vmatpush2.msra.mxu0 0.0
    %501 = vmatprep.subr.mxu0 0.0
    %502 = vmatpush2.msra.mxu0 0.0
    %503 = vmatprep.subr.mxu0 0.0
    %504 = vmatpush2.msra.mxu0 0.0
    %505 = vmatprep.subr.mxu0 0.0
    %506 = vmatpush2.msra.mxu0 0.0
    %507 = vmatprep.subr.mxu0 0.0
    %508 = vmatpush2.msra.mxu0 0.0
    %509 = vmatprep.subr.mxu0 0.0
    %510 = vmatpush2.msra.mxu0 0.0
    %511 = vmatprep.subr.mxu0 0.0
    %512 = vmatpush2.msra.mxu0 0.0
    %513 = vmatprep.subr.mxu0 0.0
    %514 = vmatpush2.msra.mxu0 0.0
    %515 = vmatprep.subr.mxu0 0.0
    %516 = vmatpush2.msra.mxu0 0.0
    %517 = vmatprep.subr.mxu0 0.0
    %518 = vmatpush2.msra.mxu0 0.0
    %519 = vmatprep.subr.mxu0 0.0
    %520 = vmatpush2.msra.mxu0 0.0
    %521 = vmatprep.subr.mxu0 0.0
    %522 = vmatpush2.msra.mxu0 0.0
    %523 = vmatprep.mubr.f32.mxu0 0.0
    %524 = vmatmul.mubr.f32.gmra.mxu0 %v457
    %v525 = vpop.f32.mrf.mxu0
    %v526 = vadd.f32 0.0, %v525
    %v527 = vpop.f32.mrf.mxu0
    %528 = vdwg.mxu0
    %v529 = vmul.f32 %v526, 0.125
    %530 = vst.msk [vmem:[#allocation2] sm:$0xff] %vm31, %v529
    // Predicated region
    $region22: #{tpu_custom_call.1} parent=1 // pred_check
      _
    $region23: #{tpu_custom_call.1} parent=1 // pred_check_branch
      %532 = sbr.rel (0) target = $region25
    $region24: #{tpu_custom_call.1} parent=1 // pred_region
      %s534 = ssub.s32 128, 128
      %535 = vsyncadd [#allocation3], %s534
      %s537 = sshll.u32 [#allocation2], 4
      %s538 = int_to_ptr.vmem [resolvable:$true] %s537
      %540 = dma.vmem_to_hbm [thread:$0]  %s538, 128, %s5, [#allocation3]
    $region25: #{tpu_custom_call.1} parent=1 // pred_fallthru
      _
    // Predicated region
    $region26: #{tpu_custom_call.1} parent=1 // pred_check
      _
    $region27: #{tpu_custom_call.1} parent=1 // pred_check_branch
      %542 = sbr.rel (0) target = $region29
    $region28: #{tpu_custom_call.1} parent=1 // pred_region
      %543 = dma.done [#allocation3], 128
    $region29: #{tpu_custom_call.1} parent=1 // pred_fallthru
      _
    %544 = vsyncpa [#allocation3], 1

</llo_original>
